<compile_context>
chip_gen: v7x
topology: tpu7x:2x2x1
jax: 0.10.0
libtpu: 0.0.40
codegen_flags: <defaults>
</compile_context>

<pallas_src>
import functools
import math

import jax
import jax.numpy as jnp
from jax.experimental import pallas as pl
from jax.experimental.pallas import tpu as pltpu

_WIDE_LANES = 1024          # preferred lane-dense last dim for the flatten path
_NARROW_LANES = 128         # minimum lane width
_SUBLANE_GRAN = 16          # row-tile granularity (safe for f32 and bf16)


def _round_up(a, b):
    return (a + b - 1) // b * b


def _chip_profile():
    """Trace-time chip detection; conservative defaults if unknown."""
    try:
        kind = jax.devices()[0].device_kind.lower()
    except Exception:  # pragma: no cover
        kind = ""
    if "v7" in kind or "7x" in kind:
        # 4 x 4 MiB buffers = 16 MiB < 32 MiB default scoped VMEM on v7x.
        return {"block_bytes": 4 << 20, "dual_tc": True, "bf16_compute": True}
    if "v6" in kind:
        return {"block_bytes": 4 << 20, "dual_tc": False, "bf16_compute": False}
    # v5e / unknown: 2 MiB blocks -> 8 MiB total buffering < 16 MiB default.
    return {"block_bytes": 2 << 20, "dual_tc": False, "bf16_compute": False}


def _gelu_kernel(x_ref, o_ref, *, compute_dtype):
    x = x_ref[...].astype(compute_dtype)
    c = jnp.asarray(math.sqrt(2.0 / math.pi), compute_dtype)
    c3 = jnp.asarray(math.sqrt(2.0 / math.pi) * 0.044715, compute_dtype)
    inner = x * (c + c3 * (x * x))            # == c * (x + 0.044715 * x^3)
    one = jnp.asarray(1.0, compute_dtype)
    half = jnp.asarray(0.5, compute_dtype)
    y = half * x * (one + jnp.tanh(inner))    # tanh rides the EUP slot
    o_ref[...] = y.astype(o_ref.dtype)


def _gelu_jnp(x, compute_dtype):
    """Plain-jnp fallback for tiny inputs / ragged tails (< 128 elements)."""
    xf = x.astype(compute_dtype)
    c = math.sqrt(2.0 / math.pi)
    y = 0.5 * xf * (1.0 + jnp.tanh(c * (xf + 0.044715 * (xf * xf * xf))))
    return y.astype(x.dtype)


def _run_gelu_2d(x2d, *, block_bytes, dual_tc, compute_dtype):
    """Pallas GELU over a 2-D array whose last dim is a multiple of 128."""
    rows, cols = x2d.shape
    itemsize = jnp.dtype(x2d.dtype).itemsize

    # Column tiling only if even a minimal-height full-width block would blow
    # past the per-block byte target (very large trailing dims).
    if cols * itemsize * _SUBLANE_GRAN <= block_bytes:
        col_tile = cols
    else:
        col_tile = block_bytes // (_SUBLANE_GRAN * itemsize)
        col_tile = max(_NARROW_LANES, col_tile // _NARROW_LANES * _NARROW_LANES)
        col_tile = min(col_tile, cols)

    row_tile = max(_SUBLANE_GRAN, block_bytes // (col_tile * itemsize))
    row_tile = _round_up(row_tile, _SUBLANE_GRAN)
    if rows <= row_tile:
        row_tile = rows  # one full-rows block: always a legal block shape

    # Dual-TensorCore (v7x) balancing: even row-step count so both cores get
    # comparable work.  Single-TC chips keep the long serial DMA blocks.
    if dual_tc and col_tile == cols and rows >= 2 * _SUBLANE_GRAN:
        n_steps = pl.cdiv(rows, row_tile)
        if n_steps == 1:
            n_steps = 2
        elif n_steps <= 8 and (n_steps % 2):
            n_steps += 1
        row_tile = min(rows, _round_up(pl.cdiv(rows, n_steps), _SUBLANE_GRAN))

    grid = (pl.cdiv(rows, row_tile), pl.cdiv(cols, col_tile))
    kernel = functools.partial(_gelu_kernel, compute_dtype=compute_dtype)
    return pl.pallas_call(
        kernel,
        out_shape=jax.ShapeDtypeStruct((rows, cols), x2d.dtype),
        grid_spec=pltpu.PrefetchScalarGridSpec(
            num_scalar_prefetch=0,
            grid=grid,
            in_specs=[pl.BlockSpec((row_tile, col_tile), lambda i, j: (i, j))],
            out_specs=pl.BlockSpec((row_tile, col_tile), lambda i, j: (i, j)),
        ),
        compiler_params=pltpu.CompilerParams(
            dimension_semantics=("parallel", "parallel"),
        ),
    )(x2d)


@jax.jit
def gelu(x):
    """Tanh-approximation GELU matching the PyTorch module (layout preserved)."""
    orig_shape = x.shape
    if x.size == 0:
        return x

    prof = _chip_profile()
    compute_dtype = (jnp.bfloat16
                     if (prof["bf16_compute"] and x.dtype == jnp.bfloat16)
                     else jnp.float32)
    run = functools.partial(_run_gelu_2d,
                            block_bytes=prof["block_bytes"],
                            dual_tc=prof["dual_tc"],
                            compute_dtype=compute_dtype)

    # Fast path: trailing dim already lane-aligned -> collapse only leading
    # dims (layout-preserving, no relayout copies around the kernel).
    if x.ndim >= 2 and orig_shape[-1] % _NARROW_LANES == 0:
        out2d = run(x.reshape(-1, orig_shape[-1]))
        return out2d.reshape(orig_shape)

    # Fallback: flatten and pick the widest lane-dense layout dividing n.
    flat = x.reshape(-1)
    n = flat.shape[0]
    if n % _WIDE_LANES == 0:
        lanes, aligned_n = _WIDE_LANES, n
    elif n % _NARROW_LANES == 0:
        lanes, aligned_n = _NARROW_LANES, n
    else:
        lanes = _NARROW_LANES
        aligned_n = (n // _NARROW_LANES) * _NARROW_LANES

    if aligned_n == 0:
        # Fewer than 128 elements: a kernel launch is pure overhead.
        return _gelu_jnp(flat, compute_dtype).reshape(orig_shape)

    head = run(flat[:aligned_n].reshape(aligned_n // lanes, lanes)).reshape(-1)
    if aligned_n == n:
        return head.reshape(orig_shape)
    # Ragged tail (< 128 elements): plain jnp, no full-array pad + slice.
    tail = _gelu_jnp(flat[aligned_n:], compute_dtype)
    return jnp.concatenate([head, tail]).reshape(orig_shape)


def _gelu_ref(x):
    xf = x.astype(jnp.float32)
    y = 0.5 * xf * (1.0 + jnp.tanh(jnp.sqrt(2.0 / jnp.pi)
                                   * (xf + 0.044715 * xf ** 3)))
    return y.astype(x.dtype)


if __name__ == "__main__":
    key = jax.random.PRNGKey(0)
    # NCHW-style activation: (batch=2, C=4, H=16, W=16) -> flatten/1024-lane path.
    x = jax.random.normal(key, (2, 4, 16, 16), dtype=jnp.float32)
    y = gelu(x)
    jax.block_until_ready(y)
    assert y.shape == x.shape and y.dtype == x.dtype
    assert jnp.allclose(y, _gelu_ref(x), atol=1e-5, rtol=1e-5)

    k1, k2, k3 = jax.random.split(jax.random.PRNGKey(1), 3)

    # Lane-aligned trailing dim (layout-preserving fast path): (2, 8, 256).
    x1 = jax.random.normal(k1, (2, 8, 256), dtype=jnp.float32)
    y1 = gelu(x1)
    jax.block_until_ready(y1)
    assert y1.shape == x1.shape
    assert jnp.allclose(y1, _gelu_ref(x1), atol=1e-5, rtol=1e-5)

    # Ragged shape (128-aligned prefix kernel + plain-jnp tail).
    x2 = jax.random.normal(k2, (3, 5, 7, 11), dtype=jnp.float32)
    y2 = gelu(x2)
    jax.block_until_ready(y2)
    assert y2.shape == x2.shape
    assert jnp.allclose(y2, _gelu_ref(x2), atol=1e-5, rtol=1e-5)

    # bf16 smoke test (bf16 in-kernel compute only engages on v7x; loose tol).
    x3 = jax.random.normal(k3, (4, 128), dtype=jnp.bfloat16)
    y3 = gelu(x3)
    jax.block_until_ready(y3)
    assert y3.shape == x3.shape and y3.dtype == x3.dtype
    assert jnp.allclose(y3.astype(jnp.float32), _gelu_ref(x3).astype(jnp.float32),
                        atol=0.1, rtol=0.1)

    print("KERNEL_OK")
</pallas_src>

<mosaic_0001>
module attributes {stable_mosaic.version = 11 : i64} {
  func.func @_gelu_kernel(%arg0: i32, %arg1: i32, %arg2: memref<2x1024xf32, #tpu.memory_space<vmem>>, %arg3: memref<2x1024xf32, #tpu.memory_space<vmem>>) attributes {dimension_semantics = [#tpu.dimension_semantics<parallel>, #tpu.dimension_semantics<parallel>], iteration_bounds = array<i64: 1, 1>, scalar_prefetch = 0 : i64, scratch_operands = 0 : i64, tpu.core_type = #tpu.core_type<tc>, window_params = [{transform_indices = @transform_0, window_bounds = array<i64: 2, 1024>}, {transform_indices = @transform_1, window_bounds = array<i64: 2, 1024>}]} {
    %c0 = arith.constant 0 : index
    %c0_0 = arith.constant 0 : index
    %0 = vector.load %arg2[%c0, %c0_0] : memref<2x1024xf32, #tpu.memory_space<vmem>>, vector<2x1024xf32>
    %1 = arith.mulf %0, %0 : vector<2x1024xf32>
    %cst = arith.constant 0.0356774069 : f32
    %2 = vector.broadcast %cst : f32 to vector<2x1024xf32>
    %3 = arith.mulf %2, %1 : vector<2x1024xf32>
    %cst_1 = arith.constant 0.797884583 : f32
    %4 = vector.broadcast %cst_1 : f32 to vector<2x1024xf32>
    %5 = arith.addf %4, %3 : vector<2x1024xf32>
    %6 = arith.mulf %0, %5 : vector<2x1024xf32>
    %cst_2 = arith.constant 5.000000e-01 : f32
    %7 = vector.broadcast %cst_2 : f32 to vector<2x1024xf32>
    %8 = arith.mulf %7, %0 : vector<2x1024xf32>
    %9 = math.tanh %6 : vector<2x1024xf32>
    %cst_3 = arith.constant 1.000000e+00 : f32
    %10 = vector.broadcast %cst_3 : f32 to vector<2x1024xf32>
    %11 = arith.addf %10, %9 : vector<2x1024xf32>
    %12 = arith.mulf %8, %11 : vector<2x1024xf32>
    %c0_4 = arith.constant 0 : index
    %c0_5 = arith.constant 0 : index
    %13 = vector.load %arg3[%c0_4, %c0_5] : memref<2x1024xf32, #tpu.memory_space<vmem>>, vector<2x1024xf32>
    tpu.vector_store %arg3[%c0_4, %c0_5], %12 {strides = array<i32>} : memref<2x1024xf32, #tpu.memory_space<vmem>>, vector<2x1024xf32>,
    return
  }
  func.func @transform_0(%arg0: i32, %arg1: i32) -> (i32, i32) {
    %c0_i32 = arith.constant 0 : i32
    return %arg0, %arg1 : i32, i32
  }
  func.func @transform_1(%arg0: i32, %arg1: i32) -> (i32, i32) {
    %c0_i32 = arith.constant 0 : i32
    return %arg0, %arg1 : i32, i32
  }
}

</mosaic_0001>

<llo_original>
// kernel: gelu.1
$region0: #{gelu.1}
  #allocation0 [shape = 'u32[]', space=smem, size = 0x4, offset = 0x4, fixed_abs, tag = 'smem constant byte address 0x4 - core index']
  #allocation1 [shape = 'u32[144,128]{1,0:T(1,128)}', space=vmem, size = 0x12000, scoped, tag = 'internal scratch']
  %s0 = inlined_call_operand.vmem [shape: f32[2,1024], index: 0, kind: input, shape index: {}]
  %s1 = inlined_call_operand.vmem [shape: f32[2,1024], index: 1, kind: output, shape index: {}]
  %s2 = sld [smem:[#allocation0]]
  $region14: #{gelu.1} parent=0
    _
  %s4 = ssub.s32 1, %s2
  %s5 = scalar_select 0, %s4, %s2
  // Predicated region
  $region2: #{gelu.1} parent=0 // pred_check
    _
  $region3: #{gelu.1} parent=0 // pred_check_branch
    %7 = sbr.rel (0) target = $region5
  $region4: #{gelu.1} parent=0 // pred_region
    _
  $region5: #{gelu.1} parent=0 // pred_fallthru
    _
  %v8 = vld [vmem:[%s0] sm:$0xff]
  %v9 = vld [vmem:[%s0 + $0x8] sm:$0xff]
  %v10 = vmul.f32 %v8, %v8
  %v11 = vmul.f32 %v9, %v9
  %v12 = vmul.f32 %v10, 0.035677407
  %v13 = vmul.f32 %v11, 0.035677407
  %v14 = vadd.f32 %v12, 0.7978846
  %v15 = vadd.f32 %v13, 0.7978846
  %v16 = vmul.f32 %v8, %v14
  %v17 = vmul.f32 %v9, %v15
  %v18 = vmul.f32 %v8, 0.5
  %v19 = vmul.f32 %v9, 0.5
  %v20 = vtanh.pop %v16
  %v21 = vtanh.pop %v17
  %v22 = vadd.f32 %v20, 1.0
  %v23 = vadd.f32 %v21, 1.0
  %v24 = vmul.f32 %v18, %v22
  %v25 = vmul.f32 %v19, %v23
  %26 = vst [vmem:[%s1] sm:$0xff] %v24
  %27 = vst [vmem:[%s1 + $0x8] sm:$0xff] %v25
  // Predicated region
  $region6: #{gelu.1} parent=0 // pred_check
    _
  $region7: #{gelu.1} parent=0 // pred_check_branch
    %29 = sbr.rel (0) target = $region9
  $region8: #{gelu.1} parent=0 // pred_region
    _
  $region9: #{gelu.1} parent=0 // pred_fallthru
    _
  // Predicated region
  $region10: #{gelu.1} parent=0 // pred_check
    _
  $region11: #{gelu.1} parent=0 // pred_check_branch
    %31 = sbr.rel (0) target = $region13
  $region12: #{gelu.1} parent=0 // pred_region
    _
  $region13: #{gelu.1} parent=0 // pred_fallthru
    _

</llo_original>
